<compile_context>
chip_gen: v7x
topology: tpu7x:2x2x1
jax: 0.10.0
libtpu: 0.0.40
codegen_flags: <defaults>
</compile_context>

<pallas_src>
import jax
import jax.numpy as jnp
from jax.experimental import pallas as pl
from jax.experimental.pallas import tpu as pltpu

_MiB = 1 << 20


def _round_up(x, m):
    return ((x + m - 1) // m) * m


def _make_bce_kernel(n_logits, tm, n_cols, n_rows, blocks_per_part,
                     total_blocks, acc_rows, need_mask, need_skip):
    """Fused BCE-with-logits partial-sum kernel.

    Refs layout: (targets, logits_0..logits_{n-1},   # inputs
                  out_0..out_{n-1},                   # (1,1) SMEM partial sums
                  acc_0..acc_{n-1})                   # (acc_rows, N) VMEM accs
    Grid: (partition p [parallel], row-block j [arbitrary, reduction]).
    """
    folds = tm // acc_rows

    def kernel(*refs):
        t_ref = refs[0]
        logit_refs = refs[1:1 + n_logits]
        out_refs = refs[1 + n_logits:1 + 2 * n_logits]
        acc_refs = refs[1 + 2 * n_logits:]

        p = pl.program_id(0)
        j = pl.program_id(1)
        gb = p * blocks_per_part + j  # global row-block index

        @pl.when(j == 0)
        def _init():
            for acc in acc_refs:
                acc[...] = jnp.zeros_like(acc)

        def accumulate(valid_rows):
            y = t_ref[...].astype(jnp.float32)
            for logit_ref, acc in zip(logit_refs, acc_refs):
                x = logit_ref[...].astype(jnp.float32)
                # Numerically stable BCE-with-logits (same as PyTorch):
                #   max(x, 0) - x*y + log1p(exp(-|x|))
                per = jnp.maximum(x, 0.0) - x * y + jnp.log1p(jnp.exp(-jnp.abs(x)))
                if valid_rows is not None:
                    per = jnp.where(valid_rows, per, 0.0)
                # (tm, N) -> (folds, acc_rows, N); summing the leading dim is
                # pure VPU adds into a wide accumulator (more independent
                # chains for the 4 VALUs).  No cross-lane reduce / SMEM scalar
                # RMW in the hot loop.
                acc[...] += jnp.sum(per.reshape(folds, acc_rows, n_cols), axis=0)

        if need_mask:
            # Mask-free fast path for every full block; the (tm, 1) row mask
            # (iota + compare + select) only runs on the single tail block.
            @pl.when(gb < total_blocks - 1)
            def _fast():
                accumulate(None)

            @pl.when(gb == total_blocks - 1)
            def _tail():
                row0 = gb * tm
                rows = jax.lax.broadcasted_iota(jnp.int32, (tm, 1), 0) + row0
                accumulate(rows < n_rows)
        elif need_skip:
            @pl.when(gb < total_blocks)
            def _body():
                accumulate(None)
        else:
            accumulate(None)

        @pl.when(j == pl.num_programs(1) - 1)
        def _finalize():
            for out_ref, acc in zip(out_refs, acc_refs):
                out_ref[0, 0] = jnp.sum(acc[...])

    return kernel


def bce_with_logits_fused(targets, logits_list, *, tm=None, partitions=2,
                          cast_to_bf16=False):
    """Returns [BCEWithLogitsLoss(mean)(x, targets) * N for x in logits_list].

    Streams `targets` from HBM once for all logits arrays.
    """
    n = len(logits_list)
    assert n >= 1
    M, N = targets.shape
    for lg in logits_list:
        assert lg.shape == (M, N), "logits must match targets shape"

    if cast_to_bf16:
        # Halves HBM traffic on this bandwidth-bound kernel.  Exact for 0/1
        # targets; logits lose precision, so this is opt-in (default keeps
        # PyTorch f32 semantics).
        targets = targets.astype(jnp.bfloat16)
        logits_list = [lg.astype(jnp.bfloat16) for lg in logits_list]

    itemsizes = [jnp.dtype(a.dtype).itemsize for a in [targets] + list(logits_list)]
    # Sublane granularity: 16 for packed (sub-32-bit) dtypes, else 8.
    granule = 16 if min(itemsizes) < 4 else 8

    # Generation-aware VMEM sizing: big staging on 128 MiB chips (v5e/v6e),
    # conservative on v7x (64 MiB physical VMEM).
    try:
        vmem_cap = int(pltpu.get_tpu_info().vmem_capacity_bytes)
    except Exception:
        vmem_cap = 64 * _MiB  # conservative (v7x-sized) fallback
    staging_budget = 48 * _MiB if vmem_cap >= 100 * _MiB else 16 * _MiB

    # Per-row VMEM cost: double-buffered DMA staging for every input, plus a
    # conservative count of tile-sized f32 elementwise temporaries Mosaic
    # materializes for the BCE body.
    dma_row = sum(2 * N * isz for isz in itemsizes)
    temp_row = (4 * n + 2) * N * 4
    per_row = dma_row + temp_row
    tm_cap = max(granule, (staging_budget // per_row) // granule * granule)

    tm_req = tm_cap if tm is None else max(tm, granule)
    tm_eff = min(tm_req, tm_cap, _round_up(M, granule))
    tm_eff = max(granule, (tm_eff // granule) * granule)

    total_blocks = pl.cdiv(M, tm_eff)
    # Megacore: split the row-block reduction across partitions with
    # per-partition partial sums (summed in the wrapper).  Uneven block counts
    # pad the grid and skip the empty trailing block(s) instead of silently
    # serializing everything onto one TensorCore.
    P = max(1, min(partitions, total_blocks))
    blocks_per_part = -(-total_blocks // P)  # cdiv
    need_skip = (P * blocks_per_part) != total_blocks
    need_mask = (M % tm_eff) != 0

    # Accumulator width: widest sublane count that divides the row tile.
    acc_rows = 8
    for cand in (64, 32, 16):
        if tm_eff % cand == 0:
            acc_rows = cand
            break

    kernel = _make_bce_kernel(n, tm_eff, N, M, blocks_per_part,
                              total_blocks, acc_rows, need_mask, need_skip)

    last_block = total_blocks - 1

    def idx(p, j):
        gb = p * blocks_per_part + j
        if need_skip:
            gb = jnp.minimum(gb, last_block)  # keep padded-grid DMAs in bounds
        return (gb, 0)

    in_specs = [pl.BlockSpec((tm_eff, N), idx) for _ in range(n + 1)]
    out_specs = [
        pl.BlockSpec((1, 1), lambda p, j: (p, 0), memory_space=pltpu.SMEM)
        for _ in range(n)
    ]
    out_shapes = tuple(jax.ShapeDtypeStruct((P, 1), jnp.float32) for _ in range(n))
    scratch = [pltpu.VMEM((acc_rows, N), jnp.float32) for _ in range(n)]

    staging_bytes = tm_eff * dma_row
    temp_bytes = tm_eff * temp_row
    acc_bytes = n * acc_rows * N * 4
    vmem_limit = staging_bytes + temp_bytes + acc_bytes + 4 * _MiB
    vmem_limit = int(min(max(vmem_limit, 24 * _MiB), vmem_cap - 8 * _MiB))

    cost = pl.CostEstimate(
        flops=6 * n * M * N,
        transcendentals=2 * n * M * N,
        bytes_accessed=M * N * sum(itemsizes) + n * P * 4,
    )

    # TODO(synk): on v7x, if a profile shows one TensorCore idle, switch the
    # leading grid axis to pltpu.CORE_PARALLEL (or restructure with
    # pl.core_map) to force the 2-core split; "parallel" is the portable default.
    partials = pl.pallas_call(
        kernel,
        out_shape=out_shapes,
        grid_spec=pltpu.PrefetchScalarGridSpec(
            num_scalar_prefetch=0,
            grid=(P, blocks_per_part),
            in_specs=in_specs,
            out_specs=out_specs,
            scratch_shapes=scratch,
        ),
        compiler_params=pltpu.CompilerParams(
            dimension_semantics=("parallel", "arbitrary"),
            vmem_limit_bytes=vmem_limit,
        ),
        cost_estimate=cost,
    )(targets, *logits_list)

    inv_m = jnp.float32(1.0 / M)
    return [jnp.sum(part) * inv_m for part in partials]


def bce_with_logits_module(outputs_dict, *, tm=None, partitions=2,
                           cast_to_bf16=False):
    """Mirror of BCEWithLogits.forward over a dict of arrays (fused G+U pass)."""
    ret = {}
    targets = outputs_dict["U_TARGET_IDS"]
    names, logits_list = [], []
    if "G_LOGITS" in outputs_dict:
        names.append("BCEWithLogits Loss(G)")
        logits_list.append(outputs_dict["G_LOGITS"])
    if "U_LOGITS" in outputs_dict:
        names.append("BCEWithLogits Loss(U)")
        logits_list.append(outputs_dict["U_LOGITS"])
    if not logits_list:
        return ret
    losses = bce_with_logits_fused(targets, logits_list, tm=tm,
                                   partitions=partitions,
                                   cast_to_bf16=cast_to_bf16)
    for name, loss in zip(names, losses):
        ret[name] = loss
    return ret


def _reference(logits, targets):
    x = logits.astype(jnp.float32)
    y = targets.astype(jnp.float32)
    per = jnp.maximum(x, 0.0) - x * y + jnp.log1p(jnp.exp(-jnp.abs(x)))
    return jnp.mean(per) * targets.shape[1]


if __name__ == "__main__":
    key = jax.random.PRNGKey(0)
    k1, k2, k3, k4, k5, k6, k7, k8, k9 = jax.random.split(key, 9)

    # --- main check: fused G + U, (B, N) = (16, 256), f32 -------------------
    B, N = 16, 256
    g_logits = jax.random.normal(k1, (B, N), dtype=jnp.float32) * 2.0
    u_logits = jax.random.normal(k2, (B, N), dtype=jnp.float32) * 2.0
    targets = jax.random.bernoulli(k3, 0.3, (B, N)).astype(jnp.float32)

    outputs_dict = {
        "U_TARGET_IDS": targets,
        "G_LOGITS": g_logits,
        "U_LOGITS": u_logits,
    }
    ret = bce_with_logits_module(outputs_dict)
    jax.block_until_ready(ret)

    ref_g = _reference(g_logits, targets)
    ref_u = _reference(u_logits, targets)
    assert jnp.allclose(ret["BCEWithLogits Loss(G)"], ref_g, rtol=1e-5, atol=1e-5)
    assert jnp.allclose(ret["BCEWithLogits Loss(U)"], ref_u, rtol=1e-5, atol=1e-5)

    # --- tail-masking + parallel-partition check: M not divisible by tile ---
    M2, N2 = 20, 128
    lg2 = jax.random.normal(k4, (M2, N2), dtype=jnp.float32) * 2.0
    tg2 = jax.random.bernoulli(k5, 0.5, (M2, N2)).astype(jnp.float32)
    (loss2,) = bce_with_logits_fused(tg2, [lg2], tm=16, partitions=2)
    jax.block_until_ready(loss2)
    assert jnp.allclose(loss2, _reference(lg2, tg2), rtol=1e-5, atol=1e-5)

    # --- uneven partition split (padded grid + skipped block) + tail mask ---
    M4, N4 = 40, 128
    lg4 = jax.random.normal(k8, (M4, N4), dtype=jnp.float32) * 2.0
    tg4 = jax.random.bernoulli(k9, 0.4, (M4, N4)).astype(jnp.float32)
    (loss4,) = bce_with_logits_fused(tg4, [lg4], tm=16, partitions=2)
    jax.block_until_ready(loss4)
    assert jnp.allclose(loss4, _reference(lg4, tg4), rtol=1e-5, atol=1e-5)

    # --- bf16 logits check (halves HBM bytes; compute stays f32) ------------
    M3, N3 = 32, 128
    lg3 = (jax.random.normal(k6, (M3, N3), dtype=jnp.float32) * 2.0).astype(jnp.bfloat16)
    tg3 = jax.random.bernoulli(k7, 0.3, (M3, N3)).astype(jnp.float32)
    (loss3,) = bce_with_logits_fused(tg3, [lg3], tm=16, partitions=2)
    jax.block_until_ready(loss3)
    assert jnp.allclose(loss3, _reference(lg3, tg3), rtol=1e-5, atol=1e-5)

    print("KERNEL_OK")
</pallas_src>

<mosaic_0001>
module attributes {stable_mosaic.version = 11 : i64} {
  func.func @kernel(%arg0: i32, %arg1: i32, %arg2: memref<16x256xf32, #tpu.memory_space<vmem>>, %arg3: memref<16x256xf32, #tpu.memory_space<vmem>>, %arg4: memref<16x256xf32, #tpu.memory_space<vmem>>, %arg5: memref<1x1xf32, #tpu.memory_space<smem>>, %arg6: memref<1x1xf32, #tpu.memory_space<smem>>, %arg7: memref<16x256xf32, #tpu.memory_space<vmem>>, %arg8: memref<16x256xf32, #tpu.memory_space<vmem>>) attributes {dimension_semantics = [#tpu.dimension_semantics<parallel>, #tpu.dimension_semantics<arbitrary>], iteration_bounds = array<i64: 1, 1>, scalar_prefetch = 0 : i64, scratch_operands = 2 : i64, tpu.core_type = #tpu.core_type<tc>, window_params = [{transform_indices = @transform_0, window_bounds = array<i64: 16, 256>}, {transform_indices = @transform_1, window_bounds = array<i64: 16, 256>}, {transform_indices = @transform_2, window_bounds = array<i64: 16, 256>}, {transform_indices = @transform_3, window_bounds = array<i64: 1, 1>}, {transform_indices = @transform_4, window_bounds = array<i64: 1, 1>}]} {
    %c0_i32 = arith.constant 0 : i32
    %0 = arith.cmpi eq, %arg1, %c0_i32 : i32
    %1 = arith.extui %0 : i1 to i32
    %c0_i32_0 = arith.constant 0 : i32
    %2 = arith.cmpi ne, %1, %c0_i32_0 : i32
    scf.if %2 {
      %cst_21 = arith.constant 0.000000e+00 : f32
      %39 = vector.broadcast %cst_21 : f32 to vector<16x256xf32>
      %c0_22 = arith.constant 0 : index
      %c0_23 = arith.constant 0 : index
      %40 = vector.load %arg7[%c0_22, %c0_23] : memref<16x256xf32, #tpu.memory_space<vmem>>, vector<16x256xf32>
      tpu.vector_store %arg7[%c0_22, %c0_23], %39 {strides = array<i32>} : memref<16x256xf32, #tpu.memory_space<vmem>>, vector<16x256xf32>,
      %cst_24 = arith.constant 0.000000e+00 : f32
      %41 = vector.broadcast %cst_24 : f32 to vector<16x256xf32>
      %c0_25 = arith.constant 0 : index
      %c0_26 = arith.constant 0 : index
      %42 = vector.load %arg8[%c0_25, %c0_26] : memref<16x256xf32, #tpu.memory_space<vmem>>, vector<16x256xf32>
      tpu.vector_store %arg8[%c0_25, %c0_26], %41 {strides = array<i32>} : memref<16x256xf32, #tpu.memory_space<vmem>>, vector<16x256xf32>,
    } else {
    }
    %c0 = arith.constant 0 : index
    %c0_1 = arith.constant 0 : index
    %3 = vector.load %arg2[%c0, %c0_1] : memref<16x256xf32, #tpu.memory_space<vmem>>, vector<16x256xf32>
    %c0_2 = arith.constant 0 : index
    %c0_3 = arith.constant 0 : index
    %4 = vector.load %arg3[%c0_2, %c0_3] : memref<16x256xf32, #tpu.memory_space<vmem>>, vector<16x256xf32>
    %cst = arith.constant 0.000000e+00 : f32
    %5 = vector.broadcast %cst : f32 to vector<16x256xf32>
    %6 = arith.maximumf %4, %5 : vector<16x256xf32>
    %7 = arith.mulf %4, %3 : vector<16x256xf32>
    %8 = arith.subf %6, %7 : vector<16x256xf32>
    %9 = math.absf %4 : vector<16x256xf32>
    %cst_4 = arith.constant 0.000000e+00 : f32
    %10 = vector.broadcast %cst_4 : f32 to vector<16x256xf32>
    %11 = arith.subf %10, %9 : vector<16x256xf32>
    %12 = math.exp %11 : vector<16x256xf32>
    %13 = math.log1p %12 : vector<16x256xf32>
    %14 = arith.addf %8, %13 : vector<16x256xf32>
    %c0_5 = arith.constant 0 : index
    %c0_6 = arith.constant 0 : index
    %15 = vector.load %arg7[%c0_5, %c0_6] : memref<16x256xf32, #tpu.memory_space<vmem>>, vector<16x256xf32>
    %16 = vector.shape_cast %14 : vector<16x256xf32> to vector<1x16x256xf32>
    %cst_7 = arith.constant dense<0.000000e+00> : vector<16x256xf32>
    %17 = vector.multi_reduction <add>, %16, %cst_7 [0] : vector<1x16x256xf32> to vector<16x256xf32>
    %18 = arith.addf %15, %17 : vector<16x256xf32>
    %c0_8 = arith.constant 0 : index
    %c0_9 = arith.constant 0 : index
    %19 = vector.load %arg7[%c0_8, %c0_9] : memref<16x256xf32, #tpu.memory_space<vmem>>, vector<16x256xf32>
    tpu.vector_store %arg7[%c0_8, %c0_9], %18 {strides = array<i32>} : memref<16x256xf32, #tpu.memory_space<vmem>>, vector<16x256xf32>,
    %c0_10 = arith.constant 0 : index
    %c0_11 = arith.constant 0 : index
    %20 = vector.load %arg4[%c0_10, %c0_11] : memref<16x256xf32, #tpu.memory_space<vmem>>, vector<16x256xf32>
    %cst_12 = arith.constant 0.000000e+00 : f32
    %21 = vector.broadcast %cst_12 : f32 to vector<16x256xf32>
    %22 = arith.maximumf %20, %21 : vector<16x256xf32>
    %23 = arith.mulf %20, %3 : vector<16x256xf32>
    %24 = arith.subf %22, %23 : vector<16x256xf32>
    %25 = math.absf %20 : vector<16x256xf32>
    %cst_13 = arith.constant 0.000000e+00 : f32
    %26 = vector.broadcast %cst_13 : f32 to vector<16x256xf32>
    %27 = arith.subf %26, %25 : vector<16x256xf32>
    %28 = math.exp %27 : vector<16x256xf32>
    %29 = math.log1p %28 : vector<16x256xf32>
    %30 = arith.addf %24, %29 : vector<16x256xf32>
    %c0_14 = arith.constant 0 : index
    %c0_15 = arith.constant 0 : index
    %31 = vector.load %arg8[%c0_14, %c0_15] : memref<16x256xf32, #tpu.memory_space<vmem>>, vector<16x256xf32>
    %32 = vector.shape_cast %30 : vector<16x256xf32> to vector<1x16x256xf32>
    %cst_16 = arith.constant dense<0.000000e+00> : vector<16x256xf32>
    %33 = vector.multi_reduction <add>, %32, %cst_16 [0] : vector<1x16x256xf32> to vector<16x256xf32>
    %34 = arith.addf %31, %33 : vector<16x256xf32>
    %c0_17 = arith.constant 0 : index
    %c0_18 = arith.constant 0 : index
    %35 = vector.load %arg8[%c0_17, %c0_18] : memref<16x256xf32, #tpu.memory_space<vmem>>, vector<16x256xf32>
    tpu.vector_store %arg8[%c0_17, %c0_18], %34 {strides = array<i32>} : memref<16x256xf32, #tpu.memory_space<vmem>>, vector<16x256xf32>,
    %c0_i32_19 = arith.constant 0 : i32
    %36 = arith.cmpi eq, %arg1, %c0_i32_19 : i32
    %37 = arith.extui %36 : i1 to i32
    %c0_i32_20 = arith.constant 0 : i32
    %38 = arith.cmpi ne, %37, %c0_i32_20 : i32
    scf.if %38 {
      %c0_21 = arith.constant 0 : index
      %c0_22 = arith.constant 0 : index
      %39 = vector.load %arg7[%c0_21, %c0_22] : memref<16x256xf32, #tpu.memory_space<vmem>>, vector<16x256xf32>
      %40 = vector.shape_cast %39 : vector<16x256xf32> to vector<1x16x256xf32>
      %cst_23 = arith.constant dense<0.000000e+00> : vector<1xf32>
      %41 = vector.multi_reduction <add>, %40, %cst_23 [1, 2] : vector<1x16x256xf32> to vector<1xf32>
      %42 = vector.shape_cast %41 : vector<1xf32> to vector<1x1x1xf32>
      %43 = vector.extract %42[0, 0, 0] : f32 from vector<1x1x1xf32>
      %c0_24 = arith.constant 0 : index
      %c0_25 = arith.constant 0 : index
      %44 = memref.load %arg5[%c0_24, %c0_25] : memref<1x1xf32, #tpu.memory_space<smem>>
      memref.store %43, %arg5[%c0_24, %c0_25] : memref<1x1xf32, #tpu.memory_space<smem>>
      %c0_26 = arith.constant 0 : index
      %c0_27 = arith.constant 0 : index
      %45 = vector.load %arg8[%c0_26, %c0_27] : memref<16x256xf32, #tpu.memory_space<vmem>>, vector<16x256xf32>
      %46 = vector.shape_cast %45 : vector<16x256xf32> to vector<1x16x256xf32>
      %cst_28 = arith.constant dense<0.000000e+00> : vector<1xf32>
      %47 = vector.multi_reduction <add>, %46, %cst_28 [1, 2] : vector<1x16x256xf32> to vector<1xf32>
      %48 = vector.shape_cast %47 : vector<1xf32> to vector<1x1x1xf32>
      %49 = vector.extract %48[0, 0, 0] : f32 from vector<1x1x1xf32>
      %c0_29 = arith.constant 0 : index
      %c0_30 = arith.constant 0 : index
      %50 = memref.load %arg6[%c0_29, %c0_30] : memref<1x1xf32, #tpu.memory_space<smem>>
      memref.store %49, %arg6[%c0_29, %c0_30] : memref<1x1xf32, #tpu.memory_space<smem>>
    } else {
    }
    return
  }
  func.func @transform_0(%arg0: i32, %arg1: i32) -> (i32, i32) {
    %c1_i32 = arith.constant 1 : i32
    %0 = arith.muli %arg0, %c1_i32 : i32
    %1 = arith.addi %0, %arg1 : i32
    %c0_i32 = arith.constant 0 : i32
    %c0_i32_0 = arith.constant 0 : i32
    return %1, %c0_i32 : i32, i32
  }
  func.func @transform_1(%arg0: i32, %arg1: i32) -> (i32, i32) {
    %c1_i32 = arith.constant 1 : i32
    %0 = arith.muli %arg0, %c1_i32 : i32
    %1 = arith.addi %0, %arg1 : i32
    %c0_i32 = arith.constant 0 : i32
    %c0_i32_0 = arith.constant 0 : i32
    return %1, %c0_i32 : i32, i32
  }
  func.func @transform_2(%arg0: i32, %arg1: i32) -> (i32, i32) {
    %c1_i32 = arith.constant 1 : i32
    %0 = arith.muli %arg0, %c1_i32 : i32
    %1 = arith.addi %0, %arg1 : i32
    %c0_i32 = arith.constant 0 : i32
    %c0_i32_0 = arith.constant 0 : i32
    return %1, %c0_i32 : i32, i32
  }
  func.func @transform_3(%arg0: i32, %arg1: i32) -> (i32, i32) {
    %c0_i32 = arith.constant 0 : i32
    %c0_i32_0 = arith.constant 0 : i32
    return %arg0, %c0_i32 : i32, i32
  }
  func.func @transform_4(%arg0: i32, %arg1: i32) -> (i32, i32) {
    %c0_i32 = arith.constant 0 : i32
    %c0_i32_0 = arith.constant 0 : i32
    return %arg0, %c0_i32 : i32, i32
  }
}

</mosaic_0001>

<llo_original>
// kernel: tpu_custom_call.1
$region0: #{tpu_custom_call.1}
  #allocation0 [shape = 'u32[]', space=smem, size = 0x4, offset = 0x4, fixed_abs, tag = 'smem constant byte address 0x4 - core index']
  #allocation1 [shape = 'u32[144,128]{1,0:T(1,128)}', space=vmem, size = 0x12000, scoped, tag = 'internal scratch']
  #allocation2 [shape = 'f32[16,256]{1,0:T(8,128)}', space=vmem, size = 0x4000, scoped, tag = 'scratch operand']
  #allocation3 [shape = 'f32[16,256]{1,0:T(8,128)}', space=vmem, size = 0x4000, scoped, tag = 'scratch operand']
  %s0 = inlined_call_operand.hbm [shape: f32[16,256], index: 0, kind: input, shape index: {}]
  %s1 = inlined_call_operand.hbm [shape: f32[16,256], index: 1, kind: input, shape index: {}]
  %s2 = inlined_call_operand.hbm [shape: f32[16,256], index: 2, kind: input, shape index: {}]
  %s3 = inlined_call_operand.hbm [shape: f32[1,1], index: 3, kind: output, shape index: {0}]
  %s4 = inlined_call_operand.hbm [shape: f32[1,1], index: 4, kind: output, shape index: {1}]
  %5 = xla_tuple %s3, %s4
  %s6 = sld [smem:[#allocation0]]
  $region50: #{tpu_custom_call.1} parent=0
    _
  %s8 = ssub.s32 1, %s6
  %s9 = scalar_select 0, %s8, %s6
  $region1: #{tpu_custom_call.1} parent=0
    #allocation4 [shape = 'u8[16384]{0}', space=vmem, size = 0x4000, scoped, tag = 'input window, operand 0, single buffered']
    #allocation5 [shape = 's32[1]{0}', space=sflag, size = 0x4, scoped, tag = 'scoped memory for tpu_custom_call.1']
    #allocation6 [shape = 's32[1]{0}', space=sflag, size = 0x4, scoped, tag = 'scoped memory for tpu_custom_call.1']
    #allocation7 [shape = 'u8[16384]{0}', space=vmem, size = 0x4000, scoped, tag = 'input window, operand 1, single buffered']
    #allocation8 [shape = 's32[1]{0}', space=sflag, size = 0x4, scoped, tag = 'scoped memory for tpu_custom_call.1']
    #allocation9 [shape = 'u8[16384]{0}', space=vmem, size = 0x4000, scoped, tag = 'input window, operand 2, single buffered']
    #allocation10 [shape = 'u8[512]{0}', space=smem, size = 0x200, scoped, tag = 'output window, operand 0, single buffered']
    #allocation11 [shape = 'u8[512]{0}', space=smem, size = 0x200, scoped, tag = 'output window, operand 1, single buffered']
    #allocation12 [shape = 's32[1]{0}', space=sflag, size = 0x4, scoped, tag = 'scoped memory for tpu_custom_call.1']
    %10 = vsyncpa [#allocation5], 0
    %11 = vsyncpa [#allocation8], 0
    %12 = vsyncpa [#allocation6], 0
    %13 = vsyncpa [#allocation12], 0
    // Predicated region
    $region2: #{tpu_custom_call.1} parent=1 // pred_check
      _
    $region3: #{tpu_custom_call.1} parent=1 // pred_check_branch
      %15 = sbr.rel (0) target = $region5
    $region4: #{tpu_custom_call.1} parent=1 // pred_region
      %s16 = sadd.s32 0, 0
      %s17 = smul.u32 2, %s16
      %s19 = ssub.s32 512, 512
      %20 = vsyncadd [#allocation5], %s19
      %s21 = smul.addr %s17, 2
      %s22 = smul.addr %s21, 128
      %s23 = scalar_lea.hbm %s0, %s22
      %s24 = sshll.u32 [#allocation4], 4
      %s25 = int_to_ptr.vmem [resolvable:$true] %s24
      %30 = dma.hbm_to_vmem [thread:$0]  %s23, 512, %s25, [#allocation5], 256, 256, 16
    $region5: #{tpu_custom_call.1} parent=1 // pred_fallthru
      _
    // Predicated region
    $region6: #{tpu_custom_call.1} parent=1 // pred_check
      _
    $region7: #{tpu_custom_call.1} parent=1 // pred_check_branch
      %32 = sbr.rel (0) target = $region9
    $region8: #{tpu_custom_call.1} parent=1 // pred_region
      %s33 = sadd.s32 0, 0
      %s34 = smul.u32 2, %s33
      %s36 = ssub.s32 512, 512
      %37 = vsyncadd [#allocation8], %s36
      %s38 = smul.addr %s34, 2
      %s39 = smul.addr %s38, 128
      %s40 = scalar_lea.hbm %s1, %s39
      %s41 = sshll.u32 [#allocation7], 4
      %s42 = int_to_ptr.vmem [resolvable:$true] %s41
      %47 = dma.hbm_to_vmem [thread:$0]  %s40, 512, %s42, [#allocation8], 256, 256, 16
    $region9: #{tpu_custom_call.1} parent=1 // pred_fallthru
      _
    // Predicated region
    $region10: #{tpu_custom_call.1} parent=1 // pred_check
      _
    $region11: #{tpu_custom_call.1} parent=1 // pred_check_branch
      %49 = sbr.rel (0) target = $region13
    $region12: #{tpu_custom_call.1} parent=1 // pred_region
      %s50 = sadd.s32 0, 0
      %s51 = smul.u32 2, %s50
      %s53 = ssub.s32 512, 512
      %54 = vsyncadd [#allocation8], %s53
      %s55 = smul.addr %s51, 2
      %s56 = smul.addr %s55, 128
      %s57 = scalar_lea.hbm %s2, %s56
      %s58 = sshll.u32 [#allocation9], 4
      %s59 = int_to_ptr.vmem [resolvable:$true] %s58
      %64 = dma.hbm_to_vmem [thread:$0]  %s57, 512, %s59, [#allocation8], 256, 256, 16
    $region13: #{tpu_custom_call.1} parent=1 // pred_fallthru
      _
    // Predicated region
    $region14: #{tpu_custom_call.1} parent=1 // pred_check
      _
    $region15: #{tpu_custom_call.1} parent=1 // pred_check_branch
      %66 = sbr.rel (0) target = $region17
    $region16: #{tpu_custom_call.1} parent=1 // pred_region
      %67 = dma.done [#allocation5], 512
    $region17: #{tpu_custom_call.1} parent=1 // pred_fallthru
      _
    // Predicated region
    $region18: #{tpu_custom_call.1} parent=1 // pred_check
      _
    $region19: #{tpu_custom_call.1} parent=1 // pred_check_branch
      %69 = sbr.rel (0) target = $region21
    $region20: #{tpu_custom_call.1} parent=1 // pred_region
      %70 = dma.done [#allocation8], 512
    $region21: #{tpu_custom_call.1} parent=1 // pred_fallthru
      _
    // Predicated region
    $region22: #{tpu_custom_call.1} parent=1 // pred_check
      _
    $region23: #{tpu_custom_call.1} parent=1 // pred_check_branch
      %72 = sbr.rel (0) target = $region25
    $region24: #{tpu_custom_call.1} parent=1 // pred_region
      %73 = dma.done [#allocation8], 512
    $region25: #{tpu_custom_call.1} parent=1 // pred_fallthru
      _
    %s74 = sadd.s32 0, 0
    %s75 = smul.u32 2, %s74
    %s76 = sadd.s32 0, 0
    %s77 = smul.u32 2, %s76
    %s78 = sadd.s32 0, 0
    %s79 = smul.u32 2, %s78
    %p80 = scmp.eq.s32.totalorder 0, 0
    // Predicated region
    $region26: #{tpu_custom_call.1} parent=1 // pred_check
      %p81 = pneg %p80
    $region27: #{tpu_custom_call.1} parent=1 // pred_check_branch
      %83 = sbr.rel (%p81) target = $region29
    $region28: #{tpu_custom_call.1} parent=1 // pred_region
      %84 = vst [vmem:[#allocation2] sm:$0xff] 0.0
      %85 = vst [vmem:[#allocation2 + $0x8] sm:$0xff] 0.0
      %86 = vst [vmem:[#allocation2 + $0x10] sm:$0xff] 0.0
      %87 = vst [vmem:[#allocation2 + $0x18] sm:$0xff] 0.0
      %88 = vst [vmem:[#allocation3] sm:$0xff] 0.0
      %89 = vst [vmem:[#allocation3 + $0x8] sm:$0xff] 0.0
      %90 = vst [vmem:[#allocation3 + $0x10] sm:$0xff] 0.0
      %91 = vst [vmem:[#allocation3 + $0x18] sm:$0xff] 0.0
    $region29: #{tpu_custom_call.1} parent=1 // pred_fallthru
      _
    %v92 = vld [vmem:[#allocation4] sm:$0xff]
    %v93 = vld [vmem:[#allocation4 + $0x8] sm:$0xff]
    %v94 = vld [vmem:[#allocation4 + $0x10] sm:$0xff]
    %v95 = vld [vmem:[#allocation4 + $0x18] sm:$0xff]
    %v96 = vld [vmem:[#allocation7] sm:$0xff]
    %v97 = vld [vmem:[#allocation7 + $0x8] sm:$0xff]
    %v98 = vld [vmem:[#allocation7 + $0x10] sm:$0xff]
    %v99 = vld [vmem:[#allocation7 + $0x18] sm:$0xff]
    %v100 = vmax.f32 %v96, 0.0
    %v101 = vmax.f32 %v97, 0.0
    %v102 = vmax.f32 %v98, 0.0
    %v103 = vmax.f32 %v99, 0.0
    %v104 = vmul.f32 %v96, %v92
    %v105 = vmul.f32 %v97, %v93
    %v106 = vmul.f32 %v98, %v94
    %v107 = vmul.f32 %v99, %v95
    %v108 = vsub.f32 %v100, %v104
    %v109 = vsub.f32 %v101, %v105
    %v110 = vsub.f32 %v102, %v106
    %v111 = vsub.f32 %v103, %v107
    %v112 = vand.u32 2147483647, %v96
    %v113 = vand.u32 2147483647, %v97
    %v114 = vand.u32 2147483647, %v98
    %v115 = vand.u32 2147483647, %v99
    %v116 = vsub.f32 0.0, %v112
    %v117 = vsub.f32 0.0, %v113
    %v118 = vsub.f32 0.0, %v114
    %v119 = vsub.f32 0.0, %v115
    %v120 = vmul.f32 %v116, 1.442695
    %v121 = vpow.pop %v120
    %v122 = vmul.f32 %v117, 1.442695
    %v123 = vpow.pop %v122
    %v124 = vmul.f32 %v118, 1.442695
    %v125 = vpow.pop %v124
    %v126 = vmul.f32 %v119, 1.442695
    %v127 = vpow.pop %v126
    %v128 = vadd.f32 %v121, 1.0
    %v129 = vlog2.pop %v128
    %v130 = vmul.f32 %v129, 0.6931472
    %v131 = vmul.f32 -0.5, %v121
    %v132 = vadd.f32 %v131, 1.0
    %v133 = vmul.f32 %v132, %v121
    %v134 = vand.u32 2147483647, %v121
    %vm135 = vcmp.lt.f32.partialorder %v134, 0.0004427343
    %v136 = vsel %vm135, %v133, %v130
    %v137 = vadd.f32 %v123, 1.0
    %v138 = vlog2.pop %v137
    %v139 = vmul.f32 %v138, 0.6931472
    %v140 = vmul.f32 -0.5, %v123
    %v141 = vadd.f32 %v140, 1.0
    %v142 = vmul.f32 %v141, %v123
    %v143 = vand.u32 2147483647, %v123
    %vm144 = vcmp.lt.f32.partialorder %v143, 0.0004427343
    %v145 = vsel %vm144, %v142, %v139
    %v146 = vadd.f32 %v125, 1.0
    %v147 = vlog2.pop %v146
    %v148 = vmul.f32 %v147, 0.6931472
    %v149 = vmul.f32 -0.5, %v125
    %v150 = vadd.f32 %v149, 1.0
    %v151 = vmul.f32 %v150, %v125
    %v152 = vand.u32 2147483647, %v125
    %vm153 = vcmp.lt.f32.partialorder %v152, 0.0004427343
    %v154 = vsel %vm153, %v151, %v148
    %v155 = vadd.f32 %v127, 1.0
    %v156 = vlog2.pop %v155
    %v157 = vmul.f32 %v156, 0.6931472
    %v158 = vmul.f32 -0.5, %v127
    %v159 = vadd.f32 %v158, 1.0
    %v160 = vmul.f32 %v159, %v127
    %v161 = vand.u32 2147483647, %v127
    %vm162 = vcmp.lt.f32.partialorder %v161, 0.0004427343
    %v163 = vsel %vm162, %v160, %v157
    %v164 = vadd.f32 %v108, %v136
    %v165 = vadd.f32 %v109, %v145
    %v166 = vadd.f32 %v110, %v154
    %v167 = vadd.f32 %v111, %v163
    %v168 = vld [vmem:[#allocation2] sm:$0xff]
    %v169 = vld [vmem:[#allocation2 + $0x8] sm:$0xff]
    %v170 = vld [vmem:[#allocation2 + $0x10] sm:$0xff]
    %v171 = vld [vmem:[#allocation2 + $0x18] sm:$0xff]
    %v172 = vadd.f32 %v164, 0.0
    %v173 = vadd.f32 %v165, 0.0
    %v174 = vadd.f32 %v166, 0.0
    %v175 = vadd.f32 %v167, 0.0
    %v176 = vadd.f32 %v168, %v172
    %v177 = vadd.f32 %v169, %v173
    %v178 = vadd.f32 %v170, %v174
    %v179 = vadd.f32 %v171, %v175
    %180 = vst [vmem:[#allocation2] sm:$0xff] %v176
    %181 = vst [vmem:[#allocation2 + $0x8] sm:$0xff] %v177
    %182 = vst [vmem:[#allocation2 + $0x10] sm:$0xff] %v178
    %183 = vst [vmem:[#allocation2 + $0x18] sm:$0xff] %v179
    %v184 = vld [vmem:[#allocation9] sm:$0xff]
    %v185 = vld [vmem:[#allocation9 + $0x8] sm:$0xff]
    %v186 = vld [vmem:[#allocation9 + $0x10] sm:$0xff]
    %v187 = vld [vmem:[#allocation9 + $0x18] sm:$0xff]
    %v188 = vmax.f32 %v184, 0.0
    %v189 = vmax.f32 %v185, 0.0
    %v190 = vmax.f32 %v186, 0.0
    %v191 = vmax.f32 %v187, 0.0
    %v192 = vmul.f32 %v184, %v92
    %v193 = vmul.f32 %v185, %v93
    %v194 = vmul.f32 %v186, %v94
    %v195 = vmul.f32 %v187, %v95
    %v196 = vsub.f32 %v188, %v192
    %v197 = vsub.f32 %v189, %v193
    %v198 = vsub.f32 %v190, %v194
    %v199 = vsub.f32 %v191, %v195
    %v200 = vand.u32 2147483647, %v184
    %v201 = vand.u32 2147483647, %v185
    %v202 = vand.u32 2147483647, %v186
    %v203 = vand.u32 2147483647, %v187
    %v204 = vsub.f32 0.0, %v200
    %v205 = vsub.f32 0.0, %v201
    %v206 = vsub.f32 0.0, %v202
    %v207 = vsub.f32 0.0, %v203
    %v208 = vmul.f32 %v204, 1.442695
    %v209 = vpow.pop %v208
    %v210 = vmul.f32 %v205, 1.442695
    %v211 = vpow.pop %v210
    %v212 = vmul.f32 %v206, 1.442695
    %v213 = vpow.pop %v212
    %v214 = vmul.f32 %v207, 1.442695
    %v215 = vpow.pop %v214
    %v216 = vadd.f32 %v209, 1.0
    %v217 = vlog2.pop %v216
    %v218 = vmul.f32 %v217, 0.6931472
    %v219 = vmul.f32 -0.5, %v209
    %v220 = vadd.f32 %v219, 1.0
    %v221 = vmul.f32 %v220, %v209
    %v222 = vand.u32 2147483647, %v209
    %vm223 = vcmp.lt.f32.partialorder %v222, 0.0004427343
    %v224 = vsel %vm223, %v221, %v218
    %v225 = vadd.f32 %v211, 1.0
    %v226 = vlog2.pop %v225
    %v227 = vmul.f32 %v226, 0.6931472
    %v228 = vmul.f32 -0.5, %v211
    %v229 = vadd.f32 %v228, 1.0
    %v230 = vmul.f32 %v229, %v211
    %v231 = vand.u32 2147483647, %v211
    %vm232 = vcmp.lt.f32.partialorder %v231, 0.0004427343
    %v233 = vsel %vm232, %v230, %v227
    %v234 = vadd.f32 %v213, 1.0
    %v235 = vlog2.pop %v234
    %v236 = vmul.f32 %v235, 0.6931472
    %v237 = vmul.f32 -0.5, %v213
    %v238 = vadd.f32 %v237, 1.0
    %v239 = vmul.f32 %v238, %v213
    %v240 = vand.u32 2147483647, %v213
    %vm241 = vcmp.lt.f32.partialorder %v240, 0.0004427343
    %v242 = vsel %vm241, %v239, %v236
    %v243 = vadd.f32 %v215, 1.0
    %v244 = vlog2.pop %v243
    %v245 = vmul.f32 %v244, 0.6931472
    %v246 = vmul.f32 -0.5, %v215
    %v247 = vadd.f32 %v246, 1.0
    %v248 = vmul.f32 %v247, %v215
    %v249 = vand.u32 2147483647, %v215
    %vm250 = vcmp.lt.f32.partialorder %v249, 0.0004427343
    %v251 = vsel %vm250, %v248, %v245
    %v252 = vadd.f32 %v196, %v224
    %v253 = vadd.f32 %v197, %v233
    %v254 = vadd.f32 %v198, %v242
    %v255 = vadd.f32 %v199, %v251
    %v256 = vld [vmem:[#allocation3] sm:$0xff]
    %v257 = vld [vmem:[#allocation3 + $0x8] sm:$0xff]
    %v258 = vld [vmem:[#allocation3 + $0x10] sm:$0xff]
    %v259 = vld [vmem:[#allocation3 + $0x18] sm:$0xff]
    %v260 = vadd.f32 %v252, 0.0
    %v261 = vadd.f32 %v253, 0.0
    %v262 = vadd.f32 %v254, 0.0
    %v263 = vadd.f32 %v255, 0.0
    %v264 = vadd.f32 %v256, %v260
    %v265 = vadd.f32 %v257, %v261
    %v266 = vadd.f32 %v258, %v262
    %v267 = vadd.f32 %v259, %v263
    %268 = vst [vmem:[#allocation3] sm:$0xff] %v264
    %269 = vst [vmem:[#allocation3 + $0x8] sm:$0xff] %v265
    %270 = vst [vmem:[#allocation3 + $0x10] sm:$0xff] %v266
    %271 = vst [vmem:[#allocation3 + $0x18] sm:$0xff] %v267
    // Predicated region
    $region30: #{tpu_custom_call.1} parent=1 // pred_check
      %p272 = pneg %p80
    $region31: #{tpu_custom_call.1} parent=1 // pred_check_branch
      %274 = sbr.rel (%p272) target = $region33
    $region32: #{tpu_custom_call.1} parent=1 // pred_region
      %v275 = vld [vmem:[#allocation2] sm:$0xff]
      %v276 = vld [vmem:[#allocation2 + $0x8] sm:$0xff]
      %v277 = vld [vmem:[#allocation2 + $0x10] sm:$0xff]
      %v278 = vld [vmem:[#allocation2 + $0x18] sm:$0xff]
      %v279 = vadd.f32 %v275, %v276
      %v280 = vadd.f32 %v279, %v277
      %v281 = vadd.f32 %v280, %v278
      %282 = vadd.xlane.f32.xlu0 %v281
      %v283 = vpop.xlane.xlu0 %282
      %v284 = vrot.slane %v283, 4
      %v285 = vadd.f32 %v283, %v284
      %v286 = vrot.slane %v285, 2
      %v287 = vadd.f32 %v285, %v286
      %v288 = vrot.slane %v287, 1
      %v289 = vadd.f32 %v287, %v288
      %s290 = vtos %v289
      %s291 = scalar_lea.smem [#allocation10], 0
      %292 = sst [smem:[%s291]] %s290
      %v293 = vld [vmem:[#allocation3] sm:$0xff]
      %v294 = vld [vmem:[#allocation3 + $0x8] sm:$0xff]
      %v295 = vld [vmem:[#allocation3 + $0x10] sm:$0xff]
      %v296 = vld [vmem:[#allocation3 + $0x18] sm:$0xff]
      %v297 = vadd.f32 %v293, %v294
      %v298 = vadd.f32 %v297, %v295
      %v299 = vadd.f32 %v298, %v296
      %300 = vadd.xlane.f32.xlu0 %v299
      %v301 = vpop.xlane.xlu0 %300
      %v302 = vrot.slane %v301, 4
      %v303 = vadd.f32 %v301, %v302
      %v304 = vrot.slane %v303, 2
      %v305 = vadd.f32 %v303, %v304
      %v306 = vrot.slane %v305, 1
      %v307 = vadd.f32 %v305, %v306
      %s308 = vtos %v307
      %s309 = scalar_lea.smem [#allocation11], 0
      %310 = sst [smem:[%s309]] %s308
    $region33: #{tpu_custom_call.1} parent=1 // pred_fallthru
      _
    // Predicated region
    $region34: #{tpu_custom_call.1} parent=1 // pred_check
      _
    $region35: #{tpu_custom_call.1} parent=1 // pred_check_branch
      %312 = sbr.rel (0) target = $region37
    $region36: #{tpu_custom_call.1} parent=1 // pred_region
      %s314 = ssub.s32 16, 16
      %315 = vsyncadd [#allocation6], %s314
      %318 = dma.smem_to_hbm [#allocation10], 16, %s3, [#allocation6]
    $region37: #{tpu_custom_call.1} parent=1 // pred_fallthru
      _
    // Predicated region
    $region38: #{tpu_custom_call.1} parent=1 // pred_check
      _
    $region39: #{tpu_custom_call.1} parent=1 // pred_check_branch
      %320 = sbr.rel (0) target = $region41
    $region40: #{tpu_custom_call.1} parent=1 // pred_region
      %s322 = ssub.s32 16, 16
      %323 = vsyncadd [#allocation12], %s322
      %326 = dma.smem_to_hbm [#allocation11], 16, %s4, [#allocation12]
    $region41: #{tpu_custom_call.1} parent=1 // pred_fallthru
      _
    // Predicated region
    $region42: #{tpu_custom_call.1} parent=1 // pred_check
      _
    $region43: #{tpu_custom_call.1} parent=1 // pred_check_branch
      %328 = sbr.rel (0) target = $region45
    $region44: #{tpu_custom_call.1} parent=1 // pred_region
      %329 = dma.done [#allocation6], 16
    $region45: #{tpu_custom_call.1} parent=1 // pred_fallthru
      _
    // Predicated region
    $region46: #{tpu_custom_call.1} parent=1 // pred_check
      _
    $region47: #{tpu_custom_call.1} parent=1 // pred_check_branch
      %331 = sbr.rel (0) target = $region49
    $region48: #{tpu_custom_call.1} parent=1 // pred_region
      %332 = dma.done [#allocation12], 16
    $region49: #{tpu_custom_call.1} parent=1 // pred_fallthru
      _
    %333 = sfence
    %334 = vsyncpa [#allocation5], 1
    %335 = vsyncpa [#allocation8], 1
    %336 = vsyncpa [#allocation6], 1
    %337 = vsyncpa [#allocation12], 1

</llo_original>
